<compile_context>
chip_gen: v6e
topology: v6e:2x2x1
jax: 0.10.0
libtpu: 0.0.40
codegen_flags: <defaults>
</compile_context>

<pallas_src>
import jax
import jax.numpy as jnp
from jax import lax
from jax.experimental import pallas as pl
from jax.experimental.pallas import tpu as pltpu


# ---------------------------------------------------------------------------
# Helpers
# ---------------------------------------------------------------------------

def _round_up(x, m):
    return (x + m - 1) // m * m


def _resident_spec(shape):
    """Whole-array block with a constant index_map.

    The block never changes across grid steps, so request a single VMEM buffer
    (default pipelining would allocate two).  Falls back gracefully if this
    jax version's BlockSpec has no pipeline_mode kwarg.
    """
    try:
        return pl.BlockSpec(shape, lambda i: (0, 0),
                            pipeline_mode=pl.Buffered(1))
    except TypeError:
        return pl.BlockSpec(shape, lambda i: (0, 0))


def _choose_batch_tiling(B):
    """Pick (tile_b, B_padded): tile <=256 rows, >=2 tiles whenever possible."""
    B8 = _round_up(B, 8)
    if B8 <= 8:
        tile_b = B8
    else:
        tile_b = 8
        for cand in (256, 128, 64, 32, 16, 8):
            if B8 // cand >= 2:
                tile_b = cand
                break
    return tile_b, _round_up(B8, tile_b)


# ---------------------------------------------------------------------------
# Fused kernel (built once per static config via closure)
# ---------------------------------------------------------------------------

def _make_fused_mlp_kernel(num_layers, layer_out_dims, norm_type, ln_eps):
    """Kernel computing the full MLP for one batch tile.

    Ref layout: (x, w_0..w_{L-1}, b_0..b_{L-1},
                 [g_0..g_{L-2}, beta_0..beta_{L-2} if layer norm],
                 out_0..out_{L-1}).
    Weights are pre-transposed to bf16 [in_p, out_p]; biases/gamma/beta are
    f32 [1, out_p].  All padded columns of weights/biases are zero, so the
    padded lanes of every linear output are exactly zero and plain row sums
    double as masked sums for LayerNorm.
    """
    num_norms = num_layers - 1 if norm_type == "layer" else 0

    def kernel(*refs):
        idx = 0
        x_ref = refs[idx]; idx += 1
        w_refs = refs[idx:idx + num_layers]; idx += num_layers
        b_refs = refs[idx:idx + num_layers]; idx += num_layers
        g_refs = refs[idx:idx + num_norms]; idx += num_norms
        be_refs = refs[idx:idx + num_norms]; idx += num_norms
        out_refs = refs[idx:]

        h = x_ref[...].astype(jnp.float32)
        for l in range(num_layers):
            w = w_refs[l][...]                     # bf16 [in_p, out_p]
            b = b_refs[l][...]                     # f32  [1, out_p]
            # bf16 MXU operands, f32 accumulation.
            y = jnp.dot(h.astype(jnp.bfloat16), w,
                        preferred_element_type=jnp.float32) + b
            # Pre-norm / pre-activation output (what h_list stores).
            out_refs[l][...] = y.astype(out_refs[l].dtype)

            if l != num_layers - 1:
                h = y
                if norm_type == "layer":
                    inv_d = 1.0 / float(layer_out_dims[l])
                    # Padded lanes of h are exactly zero -> no mask needed.
                    mean = jnp.sum(h, axis=-1, keepdims=True) * inv_d
                    ex2 = jnp.sum(h * h, axis=-1, keepdims=True) * inv_d
                    var = ex2 - mean * mean
                    h = (h - mean) * lax.rsqrt(var + ln_eps)
                    # Affine (gamma/beta); padded lanes have gamma=beta=0.
                    h = h * g_refs[l][...] + be_refs[l][...]
                h = jnp.maximum(h, 0.0)             # ReLU
                # TODO(synk): training-mode dropout not implemented; identity
                # (eval mode / dropout_ratio == 0) only.

    return kernel


# ---------------------------------------------------------------------------
# Parameter preparation (one-time host-side layout + dtype change)
# ---------------------------------------------------------------------------

def prepare_params(params):
    """W[out,in] -> bf16 W_t[in_p,out_p] (128-padded); bias -> f32 [1,out_p]."""
    prepared = []
    for (w, b) in params:
        out_d, in_d = w.shape
        in_p = _round_up(in_d, 128)
        out_p = _round_up(out_d, 128)
        w_t = jnp.zeros((in_p, out_p), jnp.bfloat16).at[:in_d, :out_d].set(
            w.T.astype(jnp.bfloat16))
        b_p = jnp.zeros((1, out_p), jnp.float32).at[0, :out_d].set(b)
        prepared.append((w_t, b_p))
    return prepared


def _prepare_ln_params(ln_params, hidden_dims):
    prepared = []
    for (g, be), d in zip(ln_params, hidden_dims):
        d_p = _round_up(d, 128)
        g_p = jnp.zeros((1, d_p), jnp.float32).at[0, :d].set(g)
        be_p = jnp.zeros((1, d_p), jnp.float32).at[0, :d].set(be)
        prepared.append((g_p, be_p))
    return prepared


# ---------------------------------------------------------------------------
# Forward builder: returns a jitted callable feats -> (h_list, h)
# ---------------------------------------------------------------------------

def make_mlp_forward(params, *, norm_type="none", dropout_ratio=0.0,
                     ln_eps=1e-5, ln_params=None, out_dtype=jnp.float32):
    if norm_type == "batch":
        # TODO(synk): BatchNorm1d (running stats / batch statistics) not implemented.
        raise NotImplementedError("norm_type='batch' is not supported")
    if norm_type not in ("none", "layer"):
        raise ValueError(f"unknown norm_type: {norm_type}")
    # dropout_ratio > 0 is treated as eval mode (identity), see kernel TODO.

    num_layers = len(params)
    layer_out_dims = tuple(int(w.shape[0]) for (w, _) in params)
    input_dim = int(params[0][0].shape[1])

    prepared = prepare_params(params)     # one-time transpose + pad + bf16 cast
    in_p0 = prepared[0][0].shape[0]
    out_pads = tuple(int(w.shape[1]) for (w, _) in prepared)

    num_norms = num_layers - 1 if norm_type == "layer" else 0
    if norm_type == "layer":
        if ln_params is None:   # nn.LayerNorm defaults: gamma=1, beta=0
            ln_params = [(jnp.ones((layer_out_dims[l],), jnp.float32),
                          jnp.zeros((layer_out_dims[l],), jnp.float32))
                         for l in range(num_norms)]
        ln_prepared = _prepare_ln_params(ln_params, layer_out_dims[:num_norms])
    else:
        ln_prepared = []

    kernel = _make_fused_mlp_kernel(num_layers, layer_out_dims, norm_type,
                                    float(ln_eps))

    @jax.jit
    def forward(feats):
        B, D = feats.shape
        assert D == input_dim

        tile_b, B_p = _choose_batch_tiling(B)

        # Skip the host-side pad (an extra HBM round trip) when already aligned.
        if B_p != B or in_p0 != D:
            x_p = jnp.zeros((B_p, in_p0), feats.dtype).at[:B, :D].set(feats)
        else:
            x_p = feats

        grid = (B_p // tile_b,)
        x_spec = pl.BlockSpec((tile_b, in_p0), lambda i: (i, 0))
        w_specs = [_resident_spec(w.shape) for (w, _) in prepared]
        b_specs = [_resident_spec(b.shape) for (_, b) in prepared]
        g_specs = [_resident_spec(g.shape) for (g, _) in ln_prepared]
        be_specs = [_resident_spec(be.shape) for (_, be) in ln_prepared]

        out_shapes = tuple(jax.ShapeDtypeStruct((B_p, op), out_dtype)
                           for op in out_pads)
        out_specs = tuple(pl.BlockSpec((tile_b, op), lambda i: (i, 0))
                          for op in out_pads)

        flat_inputs = [x_p]
        flat_inputs += [w for (w, _) in prepared]
        flat_inputs += [b for (_, b) in prepared]
        flat_inputs += [g for (g, _) in ln_prepared]
        flat_inputs += [be for (_, be) in ln_prepared]

        outs = pl.pallas_call(
            kernel,
            out_shape=out_shapes,
            grid=grid,
            in_specs=[x_spec] + w_specs + b_specs + g_specs + be_specs,
            out_specs=out_specs,
            compiler_params=pltpu.CompilerParams(
                dimension_semantics=("parallel",)),
        )(*flat_inputs)

        # Slice padding off only when there is any (avoids extra HBM traffic).
        def crop(o, dim):
            if o.shape[0] == B and o.shape[1] == dim:
                return o
            return o[:B, :dim]

        h_list = [crop(outs[l], layer_out_dims[l])
                  for l in range(num_layers - 1)]
        h = crop(outs[num_layers - 1], layer_out_dims[num_layers - 1])
        return h_list, h

    return forward


# ---------------------------------------------------------------------------
# Parameter init (matches nn.Linear default: U(-1/sqrt(fan_in), +))
# ---------------------------------------------------------------------------

def init_mlp_params(key, num_layers, input_dim, hidden_dim, output_dim):
    dims = ([(input_dim, output_dim)] if num_layers == 1 else
            [(input_dim, hidden_dim)]
            + [(hidden_dim, hidden_dim)] * (num_layers - 2)
            + [(hidden_dim, output_dim)])
    params = []
    for (fan_in, fan_out) in dims:
        key, kw, kb = jax.random.split(key, 3)
        bound = 1.0 / jnp.sqrt(fan_in)
        w = jax.random.uniform(kw, (fan_out, fan_in), jnp.float32, -bound, bound)
        b = jax.random.uniform(kb, (fan_out,), jnp.float32, -bound, bound)
        params.append((w, b))
    return params


# ---------------------------------------------------------------------------
# Plain-JAX reference (mirrors the PyTorch module in eval mode, with the same
# bf16-operand / f32-accumulation matmul policy as the kernel)
# ---------------------------------------------------------------------------

def ref_forward(params, feats, norm_type, ln_params=None, ln_eps=1e-5):
    num_layers = len(params)
    h = feats.astype(jnp.float32)
    h_list = []
    for l, (w, b) in enumerate(params):
        h = jnp.dot(h.astype(jnp.bfloat16), w.T.astype(jnp.bfloat16),
                    preferred_element_type=jnp.float32) + b
        if l != num_layers - 1:
            h_list.append(h)
            if norm_type == "layer":
                if ln_params is not None:
                    g, be = ln_params[l]
                else:
                    g = jnp.ones((h.shape[-1],), jnp.float32)
                    be = jnp.zeros((h.shape[-1],), jnp.float32)
                mean = jnp.mean(h, axis=-1, keepdims=True)
                var = jnp.mean((h - mean) ** 2, axis=-1, keepdims=True)
                h = (h - mean) * lax.rsqrt(var + ln_eps) * g + be
            h = jnp.maximum(h, 0.0)
    return h_list, h


# ---------------------------------------------------------------------------
# Main
# ---------------------------------------------------------------------------

if __name__ == "__main__":
    num_layers = 3
    input_dim = 32
    hidden_dim = 32
    output_dim = 16
    batch = 16          # -> 2 batch tiles, exercises the parallel grid
    dropout_ratio = 0.0  # eval / zero dropout -> identity

    key = jax.random.PRNGKey(0)
    key, kx, kp = jax.random.split(key, 3)
    feats = jax.random.normal(kx, (batch, input_dim), jnp.float32)
    params = init_mlp_params(kp, num_layers, input_dim, hidden_dim, output_dim)

    # Non-trivial LayerNorm affine params to exercise the gamma/beta path
    # (nn.LayerNorm defaults would be gamma=1, beta=0).
    ln_params = []
    for _ in range(num_layers - 1):
        key, kg, kb = jax.random.split(key, 3)
        g = 1.0 + 0.1 * jax.random.normal(kg, (hidden_dim,), jnp.float32)
        be = 0.1 * jax.random.normal(kb, (hidden_dim,), jnp.float32)
        ln_params.append((g, be))

    atol = rtol = 5e-3
    for norm_type in ("none", "layer"):
        lp = ln_params if norm_type == "layer" else None
        fwd = make_mlp_forward(params, norm_type=norm_type,
                               dropout_ratio=dropout_ratio, ln_params=lp)
        h_list, h = fwd(feats)
        jax.block_until_ready(h)
        for hl in h_list:
            jax.block_until_ready(hl)

        ref_h_list, ref_h = ref_forward(params, feats, norm_type, lp)
        assert h.shape == (batch, output_dim)
        assert len(h_list) == num_layers - 1
        assert jnp.allclose(h, ref_h, atol=atol, rtol=rtol), \
            f"final output mismatch (norm_type={norm_type})"
        for a, r in zip(h_list, ref_h_list):
            assert a.shape == r.shape
            assert jnp.allclose(a, r, atol=atol, rtol=rtol), \
                f"hidden pre-activation mismatch (norm_type={norm_type})"

    # Unaligned batch exercises the pad-then-crop path.
    feats_small = feats[:5]
    fwd = make_mlp_forward(params, norm_type="none")
    h_list_s, h_s = fwd(feats_small)
    jax.block_until_ready(h_s)
    ref_hl_s, ref_h_s = ref_forward(params, feats_small, "none")
    assert h_s.shape == (5, output_dim)
    assert jnp.allclose(h_s, ref_h_s, atol=atol, rtol=rtol), \
        "final output mismatch (unaligned batch)"

    # norm_type='batch' must raise instead of silently falling through.
    try:
        make_mlp_forward(params, norm_type="batch")
        raise AssertionError("norm_type='batch' should have raised")
    except NotImplementedError:
        pass

    print("KERNEL_OK")
</pallas_src>

<mosaic_0001>
module attributes {stable_mosaic.version = 11 : i64} {
  func.func @kernel(%arg0: i32, %arg1: memref<8x128xf32, #tpu.memory_space<vmem>>, %arg2: memref<128x128xbf16, #tpu.memory_space<vmem>>, %arg3: memref<128x128xbf16, #tpu.memory_space<vmem>>, %arg4: memref<128x128xbf16, #tpu.memory_space<vmem>>, %arg5: memref<1x128xf32, #tpu.memory_space<vmem>>, %arg6: memref<1x128xf32, #tpu.memory_space<vmem>>, %arg7: memref<1x128xf32, #tpu.memory_space<vmem>>, %arg8: memref<8x128xf32, #tpu.memory_space<vmem>>, %arg9: memref<8x128xf32, #tpu.memory_space<vmem>>, %arg10: memref<8x128xf32, #tpu.memory_space<vmem>>) attributes {dimension_semantics = [#tpu.dimension_semantics<parallel>], iteration_bounds = array<i64: 2>, scalar_prefetch = 0 : i64, scratch_operands = 0 : i64, tpu.core_type = #tpu.core_type<tc>, window_params = [{transform_indices = @transform_0, window_bounds = array<i64: 8, 128>}, {pipeline_mode = #tpu.pipeline_mode<synchronous>, transform_indices = @transform_1, window_bounds = array<i64: 128, 128>}, {pipeline_mode = #tpu.pipeline_mode<synchronous>, transform_indices = @transform_2, window_bounds = array<i64: 128, 128>}, {pipeline_mode = #tpu.pipeline_mode<synchronous>, transform_indices = @transform_3, window_bounds = array<i64: 128, 128>}, {pipeline_mode = #tpu.pipeline_mode<synchronous>, transform_indices = @transform_4, window_bounds = array<i64: 1, 128>}, {pipeline_mode = #tpu.pipeline_mode<synchronous>, transform_indices = @transform_5, window_bounds = array<i64: 1, 128>}, {pipeline_mode = #tpu.pipeline_mode<synchronous>, transform_indices = @transform_6, window_bounds = array<i64: 1, 128>}, {transform_indices = @transform_7, window_bounds = array<i64: 8, 128>}, {transform_indices = @transform_8, window_bounds = array<i64: 8, 128>}, {transform_indices = @transform_9, window_bounds = array<i64: 8, 128>}]} {
    %c0 = arith.constant 0 : index
    %c0_0 = arith.constant 0 : index
    %0 = vector.load %arg1[%c0, %c0_0] : memref<8x128xf32, #tpu.memory_space<vmem>>, vector<8x128xf32>
    %c0_1 = arith.constant 0 : index
    %c0_2 = arith.constant 0 : index
    %1 = vector.load %arg2[%c0_1, %c0_2] : memref<128x128xbf16, #tpu.memory_space<vmem>>, vector<128x128xbf16>
    %c0_3 = arith.constant 0 : index
    %c0_4 = arith.constant 0 : index
    %2 = vector.load %arg5[%c0_3, %c0_4] : memref<1x128xf32, #tpu.memory_space<vmem>>, vector<1x128xf32>
    %3 = arith.truncf %0 : vector<8x128xf32> to vector<8x128xbf16>
    %cst = arith.constant dense<0.000000e+00> : vector<8x128xf32>
    %4 = tpu.matmul %3, %1, %cst {dimension_numbers = #tpu.dot_dimension_numbers<[1], [0], [0], [1], [0, 0, 1, 1], [], []>} : vector<8x128xbf16>, vector<128x128xbf16>, vector<8x128xf32> -> vector<8x128xf32>
    %5 = vector.broadcast %2 : vector<1x128xf32> to vector<8x128xf32>
    %6 = arith.addf %4, %5 : vector<8x128xf32>
    %c0_5 = arith.constant 0 : index
    %c0_6 = arith.constant 0 : index
    %7 = vector.load %arg8[%c0_5, %c0_6] : memref<8x128xf32, #tpu.memory_space<vmem>>, vector<8x128xf32>
    tpu.vector_store %arg8[%c0_5, %c0_6], %6 {strides = array<i32>} : memref<8x128xf32, #tpu.memory_space<vmem>>, vector<8x128xf32>,
    %cst_7 = arith.constant 0.000000e+00 : f32
    %8 = vector.broadcast %cst_7 : f32 to vector<8x128xf32>
    %9 = arith.maximumf %6, %8 : vector<8x128xf32>
    %c0_8 = arith.constant 0 : index
    %c0_9 = arith.constant 0 : index
    %10 = vector.load %arg3[%c0_8, %c0_9] : memref<128x128xbf16, #tpu.memory_space<vmem>>, vector<128x128xbf16>
    %c0_10 = arith.constant 0 : index
    %c0_11 = arith.constant 0 : index
    %11 = vector.load %arg6[%c0_10, %c0_11] : memref<1x128xf32, #tpu.memory_space<vmem>>, vector<1x128xf32>
    %12 = arith.truncf %9 : vector<8x128xf32> to vector<8x128xbf16>
    %cst_12 = arith.constant dense<0.000000e+00> : vector<8x128xf32>
    %13 = tpu.matmul %12, %10, %cst_12 {dimension_numbers = #tpu.dot_dimension_numbers<[1], [0], [0], [1], [0, 0, 1, 1], [], []>} : vector<8x128xbf16>, vector<128x128xbf16>, vector<8x128xf32> -> vector<8x128xf32>
    %14 = vector.broadcast %11 : vector<1x128xf32> to vector<8x128xf32>
    %15 = arith.addf %13, %14 : vector<8x128xf32>
    %c0_13 = arith.constant 0 : index
    %c0_14 = arith.constant 0 : index
    %16 = vector.load %arg9[%c0_13, %c0_14] : memref<8x128xf32, #tpu.memory_space<vmem>>, vector<8x128xf32>
    tpu.vector_store %arg9[%c0_13, %c0_14], %15 {strides = array<i32>} : memref<8x128xf32, #tpu.memory_space<vmem>>, vector<8x128xf32>,
    %cst_15 = arith.constant 0.000000e+00 : f32
    %17 = vector.broadcast %cst_15 : f32 to vector<8x128xf32>
    %18 = arith.maximumf %15, %17 : vector<8x128xf32>
    %c0_16 = arith.constant 0 : index
    %c0_17 = arith.constant 0 : index
    %19 = vector.load %arg4[%c0_16, %c0_17] : memref<128x128xbf16, #tpu.memory_space<vmem>>, vector<128x128xbf16>
    %c0_18 = arith.constant 0 : index
    %c0_19 = arith.constant 0 : index
    %20 = vector.load %arg7[%c0_18, %c0_19] : memref<1x128xf32, #tpu.memory_space<vmem>>, vector<1x128xf32>
    %21 = arith.truncf %18 : vector<8x128xf32> to vector<8x128xbf16>
    %cst_20 = arith.constant dense<0.000000e+00> : vector<8x128xf32>
    %22 = tpu.matmul %21, %19, %cst_20 {dimension_numbers = #tpu.dot_dimension_numbers<[1], [0], [0], [1], [0, 0, 1, 1], [], []>} : vector<8x128xbf16>, vector<128x128xbf16>, vector<8x128xf32> -> vector<8x128xf32>
    %23 = vector.broadcast %20 : vector<1x128xf32> to vector<8x128xf32>
    %24 = arith.addf %22, %23 : vector<8x128xf32>
    %c0_21 = arith.constant 0 : index
    %c0_22 = arith.constant 0 : index
    %25 = vector.load %arg10[%c0_21, %c0_22] : memref<8x128xf32, #tpu.memory_space<vmem>>, vector<8x128xf32>
    tpu.vector_store %arg10[%c0_21, %c0_22], %24 {strides = array<i32>} : memref<8x128xf32, #tpu.memory_space<vmem>>, vector<8x128xf32>,
    return
  }
  func.func @transform_0(%arg0: i32) -> (i32, i32) {
    %c0_i32 = arith.constant 0 : i32
    %c0_i32_0 = arith.constant 0 : i32
    return %arg0, %c0_i32 : i32, i32
  }
  func.func @transform_1(%arg0: i32) -> (i32, i32) {
    %c0_i32 = arith.constant 0 : i32
    %c0_i32_0 = arith.constant 0 : i32
    %c0_i32_1 = arith.constant 0 : i32
    return %c0_i32, %c0_i32_0 : i32, i32
  }
  func.func @transform_2(%arg0: i32) -> (i32, i32) {
    %c0_i32 = arith.constant 0 : i32
    %c0_i32_0 = arith.constant 0 : i32
    %c0_i32_1 = arith.constant 0 : i32
    return %c0_i32, %c0_i32_0 : i32, i32
  }
  func.func @transform_3(%arg0: i32) -> (i32, i32) {
    %c0_i32 = arith.constant 0 : i32
    %c0_i32_0 = arith.constant 0 : i32
    %c0_i32_1 = arith.constant 0 : i32
    return %c0_i32, %c0_i32_0 : i32, i32
  }
  func.func @transform_4(%arg0: i32) -> (i32, i32) {
    %c0_i32 = arith.constant 0 : i32
    %c0_i32_0 = arith.constant 0 : i32
    %c0_i32_1 = arith.constant 0 : i32
    return %c0_i32, %c0_i32_0 : i32, i32
  }
  func.func @transform_5(%arg0: i32) -> (i32, i32) {
    %c0_i32 = arith.constant 0 : i32
    %c0_i32_0 = arith.constant 0 : i32
    %c0_i32_1 = arith.constant 0 : i32
    return %c0_i32, %c0_i32_0 : i32, i32
  }
  func.func @transform_6(%arg0: i32) -> (i32, i32) {
    %c0_i32 = arith.constant 0 : i32
    %c0_i32_0 = arith.constant 0 : i32
    %c0_i32_1 = arith.constant 0 : i32
    return %c0_i32, %c0_i32_0 : i32, i32
  }
  func.func @transform_7(%arg0: i32) -> (i32, i32) {
    %c0_i32 = arith.constant 0 : i32
    %c0_i32_0 = arith.constant 0 : i32
    return %arg0, %c0_i32 : i32, i32
  }
  func.func @transform_8(%arg0: i32) -> (i32, i32) {
    %c0_i32 = arith.constant 0 : i32
    %c0_i32_0 = arith.constant 0 : i32
    return %arg0, %c0_i32 : i32, i32
  }
  func.func @transform_9(%arg0: i32) -> (i32, i32) {
    %c0_i32 = arith.constant 0 : i32
    %c0_i32_0 = arith.constant 0 : i32
    return %arg0, %c0_i32 : i32, i32
  }
}

</mosaic_0001>

<llo_original>
// kernel: forward.1
$region0: #{forward.1}
  #allocation0 [shape = 'u32[]', space=smem, size = 0x4, offset = 0x4, fixed_abs, tag = 'smem constant byte address 0x4 - core index']
  #allocation1 [shape = 'u32[144,128]{1,0:T(1,128)}', space=vmem, size = 0x12000, scoped, tag = 'internal scratch']
  %s0 = inlined_call_operand.vmem [shape: f32[16,128], index: 0, kind: input, shape index: {}]
  %s1 = inlined_call_operand.hbm [shape: bf16[128,128], index: 1, kind: input, shape index: {}]
  %s2 = inlined_call_operand.hbm [shape: bf16[128,128], index: 2, kind: input, shape index: {}]
  %s3 = inlined_call_operand.vmem [shape: bf16[128,128], index: 3, kind: input, shape index: {}]
  %s4 = inlined_call_operand.vmem [shape: f32[1,128], index: 4, kind: input, shape index: {}]
  %s5 = inlined_call_operand.vmem [shape: f32[1,128], index: 5, kind: input, shape index: {}]
  %s6 = inlined_call_operand.vmem [shape: f32[1,128], index: 6, kind: input, shape index: {}]
  %s7 = inlined_call_operand.hbm [shape: f32[16,128], index: 7, kind: output, shape index: {0}]
  %s8 = inlined_call_operand.hbm [shape: f32[16,128], index: 8, kind: output, shape index: {1}]
  %s9 = inlined_call_operand.hbm [shape: f32[16,128], index: 9, kind: output, shape index: {2}]
  %10 = xla_tuple %s7, %s8, %s9
  %s11 = sld [smem:[#allocation0]]
  $region85: #{forward.1} parent=0
    _
  %s13 = ssub.s32 1, %s11
  %s14 = scalar_select 0, %s13, %s11
  $region1: #{forward.1} parent=0
    #allocation2 [shape = 'u8[32768]{0}', space=vmem, size = 0x8000, scoped, tag = 'input window, operand 1, single buffered']
    #allocation3 [shape = 's32[2]{0}', space=sflag, size = 0x8, scoped, tag = 'scoped memory for forward.1']
    #allocation4 [shape = 's32[2]{0}', space=sflag, size = 0x8, scoped, tag = 'scoped memory for forward.1']
    #allocation5 [shape = 'u8[32768]{0}', space=vmem, size = 0x8000, scoped, tag = 'input window, operand 2, single buffered']
    #allocation6 [shape = 's32[1]{0}', space=sflag, size = 0x4, scoped, tag = 'scoped memory for forward.1']
    #allocation7 [shape = 'u8[8192]{0}', space=vmem, size = 0x2000, scoped, tag = 'output window, operand 0']
    #allocation8 [shape = 'u8[8192]{0}', space=vmem, size = 0x2000, scoped, tag = 'output window, operand 1']
    #allocation9 [shape = 's32[2]{0}', space=sflag, size = 0x8, scoped, tag = 'scoped memory for forward.1']
    #allocation10 [shape = 'u8[8192]{0}', space=vmem, size = 0x2000, scoped, tag = 'output window, operand 2']
    %15 = vsyncpa [#allocation3], 0
    %16 = vsyncpa [#allocation6], 0
    %17 = vsyncpa [#allocation4], 0
    %s18 = scalar_lea.sflag [#allocation4], 1
    %19 = vsyncpa %s18, 0
    %20 = vsyncpa [#allocation9], 0
    %s21 = scalar_lea.sflag [#allocation9], 1
    %22 = vsyncpa %s21, 0
    loop: start=0, step=1, limit=4
    $region2: #{forward.1} parent=1 // loop_pre_header
      _
    $region3: #{forward.1} parent=1 // loop_header
      %s24 = sphi 0, %s28
      %p25 = scmp.ge.s32.totalorder %s24, 4
      %s34 = sphi 0, %s36
      %s37 = sphi 0, %s34
      %s38 = sphi 0, %s37
      %s54 = sphi 0, %s38
      %s58 = sphi 0, %s58
      %s60 = sphi 0, %s58
      %s61 = sphi 0, %s60
      %s75 = sphi 0, %s61
      %s79 = sphi 0, %s79
      %s81 = sphi 0, %s79
      %s82 = sphi 0, %s81
      %s96 = sphi 0, %s82
      %s100 = sphi 0, %s100
      %s102 = sphi 0, %s100
      %s103 = sphi 0, %s102
      %s117 = sphi 0, %s103
      %s121 = sphi 0, %s121
      %s123 = sphi 0, %s121
      %s124 = sphi 0, %s123
      %s138 = sphi 0, %s124
      %s142 = sphi 0, %s142
      %s144 = sphi 0, %s142
      %s145 = sphi 0, %s144
      %s159 = sphi 0, %s145
      %s163 = sphi 0, %s163
      %s165 = sphi 0, %s163
      %s166 = sphi 0, %s165
      %s180 = sphi 0, %s166
      %s186 = sphi 0, %s188
      %s189 = sphi 0, %s186
      %s190 = sphi 0, %s189
      %s206 = sphi 0, %s190
      %s212 = sphi 0, %s214
      %s215 = sphi 0, %s212
      %s216 = sphi 0, %s215
      %s232 = sphi 0, %s216
      %s238 = sphi 0, %s240
      %s241 = sphi 0, %s238
      %s242 = sphi 0, %s241
      %s258 = sphi 0, %s242
    $region4: #{forward.1} parent=1 // loop_header_branch
      %27 = sbr.rel (%p25) target = $region8
    $region5: #{forward.1} parent=1 // loop_body
      %s29 = ssub.s32 %s24, 1
      %s30 = ssub.s32 %s24, 2
      %s31 = sadd.s32 %s24, 1
      %s32 = ssub.s32 %s24, %s31
      %p33 = scmp.eq.s32.totalorder %s32, 0
      %s35 = sadd.s32 %s34, 1
      %s36 = scalar_select %p33, %s34, %s35
      %p39 = pneg %p33
      %p40 = scmp.eq.s32.totalorder %s24, 1
      %p41 = por %p39, %p40
      %p42 = scmp.ne.s32.totalorder %s34, %s37
      %p43 = scmp.eq.s32.totalorder %s24, 0
      %p44 = por %p42, %p43
      %p45 = scmp.ne.s32.totalorder %s34, %s37
      %p46 = scmp.eq.s32.totalorder %s29, 1
      %p47 = por %p45, %p46
      %p48 = scmp.ne.s32.totalorder %s37, %s38
      %p49 = scmp.eq.s32.totalorder %s29, 0
      %p50 = por %p48, %p49
      %p51 = scmp.ne.s32.totalorder %s37, %s38
      %p52 = scmp.eq.s32.totalorder %s30, 1
      %p53 = por %p51, %p52
      %p55 = scmp.ne.s32.totalorder %s38, %s54
      %p56 = scmp.eq.s32.totalorder %s30, 0
      %p57 = por %p55, %p56
      %s59 = sadd.s32 %s58, 1
      %p62 = scmp.eq.s32.totalorder %s24, 1
      %p63 = scmp.ne.s32.totalorder %s58, %s60
      %p64 = scmp.eq.s32.totalorder %s24, 0
      %p65 = por %p63, %p64
      %p66 = scmp.ne.s32.totalorder %s58, %s60
      %p67 = scmp.eq.s32.totalorder %s29, 1
      %p68 = por %p66, %p67
      %p69 = scmp.ne.s32.totalorder %s60, %s61
      %p70 = scmp.eq.s32.totalorder %s29, 0
      %p71 = por %p69, %p70
      %p72 = scmp.ne.s32.totalorder %s60, %s61
      %p73 = scmp.eq.s32.totalorder %s30, 1
      %p74 = por %p72, %p73
      %p76 = scmp.ne.s32.totalorder %s61, %s75
      %p77 = scmp.eq.s32.totalorder %s30, 0
      %p78 = por %p76, %p77
      %s80 = sadd.s32 %s79, 1
      %p83 = scmp.eq.s32.totalorder %s24, 1
      %p84 = scmp.ne.s32.totalorder %s79, %s81
      %p85 = scmp.eq.s32.totalorder %s24, 0
      %p86 = por %p84, %p85
      %p87 = scmp.ne.s32.totalorder %s79, %s81
      %p88 = scmp.eq.s32.totalorder %s29, 1
      %p89 = por %p87, %p88
      %p90 = scmp.ne.s32.totalorder %s81, %s82
      %p91 = scmp.eq.s32.totalorder %s29, 0
      %p92 = por %p90, %p91
      %p93 = scmp.ne.s32.totalorder %s81, %s82
      %p94 = scmp.eq.s32.totalorder %s30, 1
      %p95 = por %p93, %p94
      %p97 = scmp.ne.s32.totalorder %s82, %s96
      %p98 = scmp.eq.s32.totalorder %s30, 0
      %p99 = por %p97, %p98
      %s101 = sadd.s32 %s100, 1
      %p104 = scmp.eq.s32.totalorder %s24, 1
      %p105 = scmp.ne.s32.totalorder %s100, %s102
      %p106 = scmp.eq.s32.totalorder %s24, 0
      %p107 = por %p105, %p106
      %p108 = scmp.ne.s32.totalorder %s100, %s102
      %p109 = scmp.eq.s32.totalorder %s29, 1
      %p110 = por %p108, %p109
      %p111 = scmp.ne.s32.totalorder %s102, %s103
      %p112 = scmp.eq.s32.totalorder %s29, 0
      %p113 = por %p111, %p112
      %p114 = scmp.ne.s32.totalorder %s102, %s103
      %p115 = scmp.eq.s32.totalorder %s30, 1
      %p116 = por %p114, %p115
      %p118 = scmp.ne.s32.totalorder %s103, %s117
      %p119 = scmp.eq.s32.totalorder %s30, 0
      %p120 = por %p118, %p119
      %s122 = sadd.s32 %s121, 1
      %p125 = scmp.eq.s32.totalorder %s24, 1
      %p126 = scmp.ne.s32.totalorder %s121, %s123
      %p127 = scmp.eq.s32.totalorder %s24, 0
      %p128 = por %p126, %p127
      %p129 = scmp.ne.s32.totalorder %s121, %s123
      %p130 = scmp.eq.s32.totalorder %s29, 1
      %p131 = por %p129, %p130
      %p132 = scmp.ne.s32.totalorder %s123, %s124
      %p133 = scmp.eq.s32.totalorder %s29, 0
      %p134 = por %p132, %p133
      %p135 = scmp.ne.s32.totalorder %s123, %s124
      %p136 = scmp.eq.s32.totalorder %s30, 1
      %p137 = por %p135, %p136
      %p139 = scmp.ne.s32.totalorder %s124, %s138
      %p140 = scmp.eq.s32.totalorder %s30, 0
      %p141 = por %p139, %p140
      %s143 = sadd.s32 %s142, 1
      %p146 = scmp.eq.s32.totalorder %s24, 1
      %p147 = scmp.ne.s32.totalorder %s142, %s144
      %p148 = scmp.eq.s32.totalorder %s24, 0
      %p149 = por %p147, %p148
      %p150 = scmp.ne.s32.totalorder %s142, %s144
      %p151 = scmp.eq.s32.totalorder %s29, 1
      %p152 = por %p150, %p151
      %p153 = scmp.ne.s32.totalorder %s144, %s145
      %p154 = scmp.eq.s32.totalorder %s29, 0
      %p155 = por %p153, %p154
      %p156 = scmp.ne.s32.totalorder %s144, %s145
      %p157 = scmp.eq.s32.totalorder %s30, 1
      %p158 = por %p156, %p157
      %p160 = scmp.ne.s32.totalorder %s145, %s159
      %p161 = scmp.eq.s32.totalorder %s30, 0
      %p162 = por %p160, %p161
      %s164 = sadd.s32 %s163, 1
      %p167 = scmp.eq.s32.totalorder %s24, 1
      %p168 = scmp.ne.s32.totalorder %s163, %s165
      %p169 = scmp.eq.s32.totalorder %s24, 0
      %p170 = por %p168, %p169
      %p171 = scmp.ne.s32.totalorder %s163, %s165
      %p172 = scmp.eq.s32.totalorder %s29, 1
      %p173 = por %p171, %p172
      %p174 = scmp.ne.s32.totalorder %s165, %s166
      %p175 = scmp.eq.s32.totalorder %s29, 0
      %p176 = por %p174, %p175
      %p177 = scmp.ne.s32.totalorder %s165, %s166
      %p178 = scmp.eq.s32.totalorder %s30, 1
      %p179 = por %p177, %p178
      %p181 = scmp.ne.s32.totalorder %s166, %s180
      %p182 = scmp.eq.s32.totalorder %s30, 0
      %p183 = por %p181, %p182
      %s184 = ssub.s32 %s24, %s31
      %p185 = scmp.eq.s32.totalorder %s184, 0
      %s187 = sadd.s32 %s186, 1
      %s188 = scalar_select %p185, %s186, %s187
      %p191 = pneg %p185
      %p192 = scmp.eq.s32.totalorder %s24, 1
      %p193 = por %p191, %p192
      %p194 = scmp.ne.s32.totalorder %s186, %s189
      %p195 = scmp.eq.s32.totalorder %s24, 0
      %p196 = por %p194, %p195
      %p197 = scmp.ne.s32.totalorder %s186, %s189
      %p198 = scmp.eq.s32.totalorder %s29, 1
      %p199 = por %p197, %p198
      %p200 = scmp.ne.s32.totalorder %s189, %s190
      %p201 = scmp.eq.s32.totalorder %s29, 0
      %p202 = por %p200, %p201
      %p203 = scmp.ne.s32.totalorder %s189, %s190
      %p204 = scmp.eq.s32.totalorder %s30, 1
      %p205 = por %p203, %p204
      %p207 = scmp.ne.s32.totalorder %s190, %s206
      %p208 = scmp.eq.s32.totalorder %s30, 0
      %p209 = por %p207, %p208
      %s210 = ssub.s32 %s24, %s31
      %p211 = scmp.eq.s32.totalorder %s210, 0
      %s213 = sadd.s32 %s212, 1
      %s214 = scalar_select %p211, %s212, %s213
      %p217 = pneg %p211
      %p218 = scmp.eq.s32.totalorder %s24, 1
      %p219 = por %p217, %p218
      %p220 = scmp.ne.s32.totalorder %s212, %s215
      %p221 = scmp.eq.s32.totalorder %s24, 0
      %p222 = por %p220, %p221
      %p223 = scmp.ne.s32.totalorder %s212, %s215
      %p224 = scmp.eq.s32.totalorder %s29, 1
      %p225 = por %p223, %p224
      %p226 = scmp.ne.s32.totalorder %s215, %s216
      %p227 = scmp.eq.s32.totalorder %s29, 0
      %p228 = por %p226, %p227
      %p229 = scmp.ne.s32.totalorder %s215, %s216
      %p230 = scmp.eq.s32.totalorder %s30, 1
      %p231 = por %p229, %p230
      %p233 = scmp.ne.s32.totalorder %s216, %s232
      %p234 = scmp.eq.s32.totalorder %s30, 0
      %p235 = por %p233, %p234
      %s236 = ssub.s32 %s24, %s31
      %p237 = scmp.eq.s32.totalorder %s236, 0
      %s239 = sadd.s32 %s238, 1
      %s240 = scalar_select %p237, %s238, %s239
      %p243 = pneg %p237
      %p244 = scmp.eq.s32.totalorder %s24, 1
      %p245 = por %p243, %p244
      %p246 = scmp.ne.s32.totalorder %s238, %s241
      %p247 = scmp.eq.s32.totalorder %s24, 0
      %p248 = por %p246, %p247
      %p249 = scmp.ne.s32.totalorder %s238, %s241
      %p250 = scmp.eq.s32.totalorder %s29, 1
      %p251 = por %p249, %p250
      %p252 = scmp.ne.s32.totalorder %s241, %s242
      %p253 = scmp.eq.s32.totalorder %s29, 0
      %p254 = por %p252, %p253
      %p255 = scmp.ne.s32.totalorder %s241, %s242
      %p256 = scmp.eq.s32.totalorder %s30, 1
      %p257 = por %p255, %p256
      %p259 = scmp.ne.s32.totalorder %s242, %s258
      %p260 = scmp.eq.s32.totalorder %s30, 0
      %p261 = por %p259, %p260
      %p262 = scmp.le.s32.totalorder 1, %s24
      %p263 = scmp.lt.s32.totalorder %s24, 3
      %p264 = pnand %p262, %p263
      %p265 = pneg %p264
      // Predicated region
      $region9: #{forward.1} parent=5 // pred_check
        _
      $region10: #{forward.1} parent=5 // pred_check_branch
        %267 = sbr.rel (%p264) target = $region12
      $region11: #{forward.1} parent=5 // pred_region
        %s268 = ssub.s32 %s24, 1
        // Predicated region
        $region13: #{forward.1} parent=11 // pred_check
          %p269 = pneg %p71
        $region14: #{forward.1} parent=11 // pred_check_branch
          %271 = sbr.rel (%p269) target = $region16
        $region15: #{forward.1} parent=11 // pred_region
          %s273 = ssub.s32 1024, 1024
          %274 = vsyncadd [#allocation3], %s273
          %s275 = sshll.u32 [#allocation2], 4
          %s276 = int_to_ptr.vmem [resolvable:$true] %s275
          %281 = dma.hbm_to_vmem [thread:$0]  %s1, 1024, %s276, [#allocation3], 64, 64, 4
        $region16: #{forward.1} parent=11 // pred_fallthru
          _
        // Predicated region
        $region17: #{forward.1} parent=11 // pred_check
          %p282 = pneg %p92
        $region18: #{forward.1} parent=11 // pred_check_branch
          %284 = sbr.rel (%p282) target = $region20
        $region19: #{forward.1} parent=11 // pred_region
          %s286 = ssub.s32 1024, 1024
          %287 = vsyncadd [#allocation6], %s286
          %s288 = sshll.u32 [#allocation5], 4
          %s289 = int_to_ptr.vmem [resolvable:$true] %s288
          %294 = dma.hbm_to_vmem [thread:$0]  %s2, 1024, %s289, [#allocation6], 64, 64, 4
        $region20: #{forward.1} parent=11 // pred_fallthru
          _
        // Predicated region
        $region21: #{forward.1} parent=11 // pred_check
          %p295 = pneg %p113
        $region22: #{forward.1} parent=11 // pred_check_branch
          %297 = sbr.rel (%p295) target = $region24
        $region23: #{forward.1} parent=11 // pred_region
          _
        $region24: #{forward.1} parent=11 // pred_fallthru
          _
        // Predicated region
        $region25: #{forward.1} parent=11 // pred_check
          %p298 = pneg %p134
        $region26: #{forward.1} parent=11 // pred_check_branch
          %300 = sbr.rel (%p298) target = $region28
        $region27: #{forward.1} parent=11 // pred_region
          _
        $region28: #{forward.1} parent=11 // pred_fallthru
          _
        // Predicated region
        $region29: #{forward.1} parent=11 // pred_check
          %p301 = pneg %p155
        $region30: #{forward.1} parent=11 // pred_check_branch
          %303 = sbr.rel (%p301) target = $region32
        $region31: #{forward.1} parent=11 // pred_region
          _
        $region32: #{forward.1} parent=11 // pred_fallthru
          _
        // Predicated region
        $region33: #{forward.1} parent=11 // pred_check
          %p304 = pneg %p176
        $region34: #{forward.1} parent=11 // pred_check_branch
          %306 = sbr.rel (%p304) target = $region36
        $region35: #{forward.1} parent=11 // pred_region
          _
        $region36: #{forward.1} parent=11 // pred_fallthru
          _
      $region12: #{forward.1} parent=5 // pred_fallthru
        _
      %p307 = scmp.lt.s32.totalorder %s24, 2
      // Predicated region
      $region37: #{forward.1} parent=5 // pred_check
        %p308 = pneg %p307
      $region38: #{forward.1} parent=5 // pred_check_branch
        %310 = sbr.rel (%p308) target = $region40
      $region39: #{forward.1} parent=5 // pred_region
        // Predicated region
        $region41: #{forward.1} parent=39 // pred_check
          %p311 = pneg %p44
        $region42: #{forward.1} parent=39 // pred_check_branch
          %313 = sbr.rel (%p311) target = $region44
        $region43: #{forward.1} parent=39 // pred_region
          %p314 = scmp.lt.s32.totalorder %s24, 1
          %s315 = scalar_select %p314, %s24, 1
          %s316 = smul.addr %s315, 8
          %s317 = scalar_lea.vmem %s0, %s316
        $region44: #{forward.1} parent=39 // pred_fallthru
          _
      $region40: #{forward.1} parent=5 // pred_fallthru
        _
      %p318 = scmp.le.s32.totalorder 1, %s24
      %p319 = scmp.lt.s32.totalorder %s24, 3
      %p320 = pnand %p318, %p319
      %p321 = pneg %p320
      // Predicated region
      $region45: #{forward.1} parent=5 // pred_check
        _
      $region46: #{forward.1} parent=5 // pred_check_branch
        %323 = sbr.rel (%p320) target = $region48
      $region47: #{forward.1} parent=5 // pred_region
        %s324 = ssub.s32 %s24, 1
        // Predicated region
        $region49: #{forward.1} parent=47 // pred_check
          %p325 = pneg %p71
        $region50: #{forward.1} parent=47 // pred_check_branch
          %327 = sbr.rel (%p325) target = $region52
        $region51: #{forward.1} parent=47 // pred_region
          %328 = dma.done [#allocation3], 1024
        $region52: #{forward.1} parent=47 // pred_fallthru
          _
        // Predicated region
        $region53: #{forward.1} parent=47 // pred_check
          %p329 = pneg %p92
        $region54: #{forward.1} parent=47 // pred_check_branch
          %331 = sbr.rel (%p329) target = $region56
        $region55: #{forward.1} parent=47 // pred_region
          %332 = dma.done [#allocation6], 1024
        $region56: #{forward.1} parent=47 // pred_fallthru
          _
        %p333 = scmp.lt.s32.totalorder %s29, 1
        %s334 = scalar_select %p333, %s29, 1
        %s335 = smul.addr %s334, 8
        %s336 = scalar_lea.vmem %s0, %s335
        %p337 = pneg %p50
        %p338 = pneg %p47
        %p339 = pneg %p71
        %p340 = pneg %p68
        %p341 = pneg %p92
        %p342 = pneg %p89
        %p343 = pneg %p113
        %p344 = pneg %p110
        %p345 = pneg %p134
        %p346 = pneg %p131
        %p347 = pneg %p155
        %p348 = pneg %p152
        %p349 = pneg %p176
        %p350 = pneg %p173
        %p351 = pneg %p202
        %p352 = pneg %p199
        %s353 = sand.u32 %s189, 1
        %s354 = scalar_lea.sflag [#allocation4], %s353
        %s355 = sand.u32 %s189, 1
        %s356 = smul.addr %s355, 8
        %s357 = scalar_lea.vmem [#allocation7], %s356
        %p358 = pneg %p228
        %p359 = pneg %p225
        %s360 = sand.u32 %s29, 1
        %s361 = scalar_lea.sflag [#allocation9], %s360
        %s362 = sand.u32 %s215, 1
        %s363 = smul.addr %s362, 8
        %s364 = scalar_lea.vmem [#allocation8], %s363
        %p365 = pneg %p254
        %p366 = pneg %p251
        %s367 = sand.u32 %s29, 1
        %s368 = scalar_lea.sflag [#allocation9], %s367
        %s369 = sand.u32 %s241, 1
        %s370 = smul.addr %s369, 8
        %s371 = scalar_lea.vmem [#allocation10], %s370
        %p372 = scmp.lt.s32.totalorder %s29, 1
        %s373 = scalar_select %p372, %s29, 1
        %s374 = smul.addr %s373, 8
        %s375 = scalar_lea.vmem %s0, %s374
        %v377 = vld [vmem:[%s375] sm:$0xff]
        %v378 = vld [vmem:[#allocation2] sm:$0xf]
        %v379 = vld [vmem:[#allocation2 + $0x4] sm:$0xf]
        %v380 = vld [vmem:[#allocation2 + $0x8] sm:$0xf]
        %v381 = vld [vmem:[#allocation2 + $0xc] sm:$0xf]
        %v382 = vld [vmem:[#allocation2 + $0x10] sm:$0xf]
        %v383 = vld [vmem:[#allocation2 + $0x14] sm:$0xf]
        %v384 = vld [vmem:[#allocation2 + $0x18] sm:$0xf]
        %v385 = vld [vmem:[#allocation2 + $0x1c] sm:$0xf]
        %v386 = vld [vmem:[#allocation2 + $0x20] sm:$0xf]
        %v387 = vld [vmem:[#allocation2 + $0x24] sm:$0xf]
        %v388 = vld [vmem:[#allocation2 + $0x28] sm:$0xf]
        %v389 = vld [vmem:[#allocation2 + $0x2c] sm:$0xf]
        %v390 = vld [vmem:[#allocation2 + $0x30] sm:$0xf]
        %v391 = vld [vmem:[#allocation2 + $0x34] sm:$0xf]
        %v392 = vld [vmem:[#allocation2 + $0x38] sm:$0xf]
        %v393 = vld [vmem:[#allocation2 + $0x3c] sm:$0xf]
        %v394 = vld [vmem:[%s4] sm:$0x1]
        %v395 = vpack.c.bf16 %v377, %v377
        %v397 = vlaneseq
        %v398 = vshrl.u32 %v397, 7
        %v399 = vsub.s32 0, %v398
        %v400 = vrot.slane %v394, %v399
        %v418 = vunpack.c.l.b16 %v378
        %v419 = vunpack.c.l.b16 %v379
        %v420 = vunpack.c.l.b16 %v380
        %v421 = vunpack.c.l.b16 %v381
        %v422 = vunpack.c.l.b16 %v382
        %v423 = vunpack.c.l.b16 %v383
        %v424 = vunpack.c.l.b16 %v384
        %v425 = vunpack.c.l.b16 %v385
        %v426 = vunpack.c.l.b16 %v386
        %v427 = vunpack.c.l.b16 %v387
        %v428 = vunpack.c.l.b16 %v388
        %v429 = vunpack.c.l.b16 %v389
        %v430 = vunpack.c.l.b16 %v390
        %v431 = vunpack.c.l.b16 %v391
        %v432 = vunpack.c.l.b16 %v392
        %v433 = vunpack.c.l.b16 %v393
        %v434 = vpack.c.b16 %v419, %v418
        %v435 = vpack.c.b16 %v421, %v420
        %v436 = vpack.c.b16 %v423, %v422
        %v437 = vpack.c.b16 %v425, %v424
        %v438 = vpack.c.b16 %v427, %v426
        %v439 = vpack.c.b16 %v429, %v428
        %v440 = vpack.c.b16 %v431, %v430
        %v441 = vpack.c.b16 %v433, %v432
        %450 = vmatprep.subr.bf16.mxu0 0
        %451 = vmatpush1.bf16.msra.mxu0 %v441
        %452 = vmatprep.subr.bf16.mxu0 0
        %453 = vmatpush1.bf16.msra.mxu0 %v440
        %454 = vmatprep.subr.bf16.mxu0 0
        %455 = vmatpush1.bf16.msra.mxu0 %v439
        %456 = vmatprep.subr.bf16.mxu0 0
        %457 = vmatpush1.bf16.msra.mxu0 %v438
        %458 = vmatprep.subr.bf16.mxu0 0
        %459 = vmatpush1.bf16.msra.mxu0 %v437
        %460 = vmatprep.subr.bf16.mxu0 0
        %461 = vmatpush1.bf16.msra.mxu0 %v436
        %462 = vmatprep.subr.bf16.mxu0 0
        %463 = vmatpush1.bf16.msra.mxu0 %v435
        %464 = vmatprep.subr.bf16.mxu0 0
        %465 = vmatpush1.bf16.msra.mxu0 %v434
        %466 = vmatprep.subr.bf16.mxu0 0
        %467 = vmatpush2.bf16.msra.mxu0 0
        %468 = vmatprep.subr.bf16.mxu0 0
        %469 = vmatpush2.bf16.msra.mxu0 0
        %470 = vmatprep.subr.bf16.mxu0 0
        %471 = vmatpush2.bf16.msra.mxu0 0
        %472 = vmatprep.subr.bf16.mxu0 0
        %473 = vmatpush2.bf16.msra.mxu0 0
        %474 = vmatprep.subr.bf16.mxu0 0
        %475 = vmatpush2.bf16.msra.mxu0 0
        %476 = vmatprep.subr.bf16.mxu0 0
        %477 = vmatpush2.bf16.msra.mxu0 0
        %478 = vmatprep.subr.bf16.mxu0 0
        %479 = vmatpush2.bf16.msra.mxu0 0
        %480 = vmatprep.subr.bf16.mxu0 0
        %481 = vmatpush2.bf16.msra.mxu0 0
        %482 = vmatprep.mubr.bf16.mxu0 0
        %483 = vmatmul.mubr.bf16.gmra.mxu0 %v395
        %v484 = vpop.f32.mrf.mxu0
        %v485 = vadd.f32 %v400, %v484
        %v486 = vpop.f32.mrf.mxu0
        %v487 = vpop.f32.mrf.mxu0
        %v488 = vpop.f32.mrf.mxu0
        %489 = vdwg.mxu0
        %490 = vst [vmem:[%s357] sm:$0xff] %v485
        %v491 = vmax.f32 %v485, 0.0
        %v492 = vld [vmem:[#allocation5] sm:$0xf]
        %v493 = vld [vmem:[#allocation5 + $0x4] sm:$0xf]
        %v494 = vld [vmem:[#allocation5 + $0x8] sm:$0xf]
        %v495 = vld [vmem:[#allocation5 + $0xc] sm:$0xf]
        %v496 = vld [vmem:[#allocation5 + $0x10] sm:$0xf]
        %v497 = vld [vmem:[#allocation5 + $0x14] sm:$0xf]
        %v498 = vld [vmem:[#allocation5 + $0x18] sm:$0xf]
        %v499 = vld [vmem:[#allocation5 + $0x1c] sm:$0xf]
        %v500 = vld [vmem:[#allocation5 + $0x20] sm:$0xf]
        %v501 = vld [vmem:[#allocation5 + $0x24] sm:$0xf]
        %v502 = vld [vmem:[#allocation5 + $0x28] sm:$0xf]
        %v503 = vld [vmem:[#allocation5 + $0x2c] sm:$0xf]
        %v504 = vld [vmem:[#allocation5 + $0x30] sm:$0xf]
        %v505 = vld [vmem:[#allocation5 + $0x34] sm:$0xf]
        %v506 = vld [vmem:[#allocation5 + $0x38] sm:$0xf]
        %v507 = vld [vmem:[#allocation5 + $0x3c] sm:$0xf]
        %v508 = vld [vmem:[%s5] sm:$0x1]
        %v509 = vpack.c.bf16 %v491, %v491
        %v511 = vlaneseq
        %v512 = vshrl.u32 %v511, 7
        %v513 = vsub.s32 0, %v512
        %v514 = vrot.slane %v508, %v513
        %v532 = vunpack.c.l.b16 %v492
        %v533 = vunpack.c.l.b16 %v493
        %v534 = vunpack.c.l.b16 %v494
        %v535 = vunpack.c.l.b16 %v495
        %v536 = vunpack.c.l.b16 %v496
        %v537 = vunpack.c.l.b16 %v497
        %v538 = vunpack.c.l.b16 %v498
        %v539 = vunpack.c.l.b16 %v499
        %v540 = vunpack.c.l.b16 %v500
        %v541 = vunpack.c.l.b16 %v501
        %v542 = vunpack.c.l.b16 %v502
        %v543 = vunpack.c.l.b16 %v503
        %v544 = vunpack.c.l.b16 %v504
        %v545 = vunpack.c.l.b16 %v505
        %v546 = vunpack.c.l.b16 %v506
        %v547 = vunpack.c.l.b16 %v507
        %v548 = vpack.c.b16 %v533, %v532
        %v549 = vpack.c.b16 %v535, %v534
        %v550 = vpack.c.b16 %v537, %v536
        %v551 = vpack.c.b16 %v539, %v538
        %v552 = vpack.c.b16 %v541, %v540
        %v553 = vpack.c.b16 %v543, %v542
        %v554 = vpack.c.b16 %v545, %v544
        %v555 = vpack.c.b16 %v547, %v546
        %564 = vmatprep.subr.bf16.mxu0 0
        %565 = vmatpush1.bf16.msra.mxu0 %v555
        %566 = vmatprep.subr.bf16.mxu0 0
        %567 = vmatpush1.bf16.msra.mxu0 %v554
        %568 = vmatprep.subr.bf16.mxu0 0
        %569 = vmatpush1.bf16.msra.mxu0 %v553
        %570 = vmatprep.subr.bf16.mxu0 0
        %571 = vmatpush1.bf16.msra.mxu0 %v552
        %572 = vmatprep.subr.bf16.mxu0 0
        %573 = vmatpush1.bf16.msra.mxu0 %v551
        %574 = vmatprep.subr.bf16.mxu0 0
        %575 = vmatpush1.bf16.msra.mxu0 %v550
        %576 = vmatprep.subr.bf16.mxu0 0
        %577 = vmatpush1.bf16.msra.mxu0 %v549
        %578 = vmatprep.subr.bf16.mxu0 0
        %579 = vmatpush1.bf16.msra.mxu0 %v548
        %580 = vmatprep.subr.bf16.mxu0 0
        %581 = vmatpush2.bf16.msra.mxu0 0
        %582 = vmatprep.subr.bf16.mxu0 0
        %583 = vmatpush2.bf16.msra.mxu0 0
        %584 = vmatprep.subr.bf16.mxu0 0
        %585 = vmatpush2.bf16.msra.mxu0 0
        %586 = vmatprep.subr.bf16.mxu0 0
        %587 = vmatpush2.bf16.msra.mxu0 0
        %588 = vmatprep.subr.bf16.mxu0 0
        %589 = vmatpush2.bf16.msra.mxu0 0
        %590 = vmatprep.subr.bf16.mxu0 0
        %591 = vmatpush2.bf16.msra.mxu0 0
        %592 = vmatprep.subr.bf16.mxu0 0
        %593 = vmatpush2.bf16.msra.mxu0 0
        %594 = vmatprep.subr.bf16.mxu0 0
        %595 = vmatpush2.bf16.msra.mxu0 0
        %596 = vmatprep.mubr.bf16.mxu0 0
        %597 = vmatmul.mubr.bf16.gmra.mxu0 %v509
        %v598 = vpop.f32.mrf.mxu0
        %v599 = vadd.f32 %v514, %v598
        %v600 = vpop.f32.mrf.mxu0
        %v601 = vpop.f32.mrf.mxu0
        %v602 = vpop.f32.mrf.mxu0
        %603 = vdwg.mxu0
        %604 = vst [vmem:[%s364] sm:$0xff] %v599
        %v605 = vmax.f32 %v599, 0.0
        %v606 = vld [vmem:[%s3] sm:$0xf]
        %v607 = vld [vmem:[%s3 + $0x4] sm:$0xf]
        %v608 = vld [vmem:[%s3 + $0x8] sm:$0xf]
        %v609 = vld [vmem:[%s3 + $0xc] sm:$0xf]
        %v610 = vld [vmem:[%s3 + $0x10] sm:$0xf]
        %v611 = vld [vmem:[%s3 + $0x14] sm:$0xf]
        %v612 = vld [vmem:[%s3 + $0x18] sm:$0xf]
        %v613 = vld [vmem:[%s3 + $0x1c] sm:$0xf]
        %v614 = vld [vmem:[%s3 + $0x20] sm:$0xf]
        %v615 = vld [vmem:[%s3 + $0x24] sm:$0xf]
        %v616 = vld [vmem:[%s3 + $0x28] sm:$0xf]
        %v617 = vld [vmem:[%s3 + $0x2c] sm:$0xf]
        %v618 = vld [vmem:[%s3 + $0x30] sm:$0xf]
        %v619 = vld [vmem:[%s3 + $0x34] sm:$0xf]
        %v620 = vld [vmem:[%s3 + $0x38] sm:$0xf]
        %v621 = vld [vmem:[%s3 + $0x3c] sm:$0xf]
        %v622 = vld [vmem:[%s6] sm:$0x1]
        %v623 = vpack.c.bf16 %v605, %v605
        %v625 = vlaneseq
        %v626 = vshrl.u32 %v625, 7
        %v627 = vsub.s32 0, %v626
        %v628 = vrot.slane %v622, %v627
        %v646 = vunpack.c.l.b16 %v606
        %v647 = vunpack.c.l.b16 %v607
        %v648 = vunpack.c.l.b16 %v608
        %v649 = vunpack.c.l.b16 %v609
        %v650 = vunpack.c.l.b16 %v610
        %v651 = vunpack.c.l.b16 %v611
        %v652 = vunpack.c.l.b16 %v612
        %v653 = vunpack.c.l.b16 %v613
        %v654 = vunpack.c.l.b16 %v614
        %v655 = vunpack.c.l.b16 %v615
        %v656 = vunpack.c.l.b16 %v616
        %v657 = vunpack.c.l.b16 %v617
        %v658 = vunpack.c.l.b16 %v618
        %v659 = vunpack.c.l.b16 %v619
        %v660 = vunpack.c.l.b16 %v620
        %v661 = vunpack.c.l.b16 %v621
        %v662 = vpack.c.b16 %v647, %v646
        %v663 = vpack.c.b16 %v649, %v648
        %v664 = vpack.c.b16 %v651, %v650
        %v665 = vpack.c.b16 %v653, %v652
        %v666 = vpack.c.b16 %v655, %v654
        %v667 = vpack.c.b16 %v657, %v656
        %v668 = vpack.c.b16 %v659, %v658
        %v669 = vpack.c.b16 %v661, %v660
        %678 = vmatprep.subr.bf16.mxu0 0
        %679 = vmatpush1.bf16.msra.mxu0 %v669
        %680 = vmatprep.subr.bf16.mxu0 0
        %681 = vmatpush1.bf16.msra.mxu0 %v668
        %682 = vmatprep.subr.bf16.mxu0 0
        %683 = vmatpush1.bf16.msra.mxu0 %v667
        %684 = vmatprep.subr.bf16.mxu0 0
        %685 = vmatpush1.bf16.msra.mxu0 %v666
        %686 = vmatprep.subr.bf16.mxu0 0
        %687 = vmatpush1.bf16.msra.mxu0 %v665
        %688 = vmatprep.subr.bf16.mxu0 0
        %689 = vmatpush1.bf16.msra.mxu0 %v664
        %690 = vmatprep.subr.bf16.mxu0 0
        %691 = vmatpush1.bf16.msra.mxu0 %v663
        %692 = vmatprep.subr.bf16.mxu0 0
        %693 = vmatpush1.bf16.msra.mxu0 %v662
        %694 = vmatprep.subr.bf16.mxu0 0
        %695 = vmatpush2.bf16.msra.mxu0 0
        %696 = vmatprep.subr.bf16.mxu0 0
        %697 = vmatpush2.bf16.msra.mxu0 0
        %698 = vmatprep.subr.bf16.mxu0 0
        %699 = vmatpush2.bf16.msra.mxu0 0
        %700 = vmatprep.subr.bf16.mxu0 0
        %701 = vmatpush2.bf16.msra.mxu0 0
        %702 = vmatprep.subr.bf16.mxu0 0
        %703 = vmatpush2.bf16.msra.mxu0 0
        %704 = vmatprep.subr.bf16.mxu0 0
        %705 = vmatpush2.bf16.msra.mxu0 0
        %706 = vmatprep.subr.bf16.mxu0 0
        %707 = vmatpush2.bf16.msra.mxu0 0
        %708 = vmatprep.subr.bf16.mxu0 0
        %709 = vmatpush2.bf16.msra.mxu0 0
        %710 = vmatprep.mubr.bf16.mxu0 0
        %711 = vmatmul.mubr.bf16.gmra.mxu0 %v623
        %v712 = vpop.f32.mrf.mxu0
        %v713 = vadd.f32 %v628, %v712
        %v714 = vpop.f32.mrf.mxu0
        %v715 = vpop.f32.mrf.mxu0
        %v716 = vpop.f32.mrf.mxu0
        %717 = vdwg.mxu0
        %718 = vst [vmem:[%s371] sm:$0xff] %v713
        %s719 = sand.u32 %s189, 1
        %s720 = scalar_lea.sflag [#allocation4], %s719
        %s721 = sand.u32 %s189, 1
        %s722 = smul.addr %s721, 8
        %s723 = scalar_lea.vmem [#allocation7], %s722
        %s724 = sand.u32 %s29, 1
        %s725 = scalar_lea.sflag [#allocation9], %s724
        %s726 = sand.u32 %s215, 1
        %s727 = smul.addr %s726, 8
        %s728 = scalar_lea.vmem [#allocation8], %s727
        %s729 = sand.u32 %s29, 1
        %s730 = scalar_lea.sflag [#allocation9], %s729
        %s731 = sand.u32 %s241, 1
        %s732 = smul.addr %s731, 8
        %s733 = scalar_lea.vmem [#allocation10], %s732
        // Predicated region
        $region57: #{forward.1} parent=47 // pred_check
          %p734 = pneg %p199
        $region58: #{forward.1} parent=47 // pred_check_branch
          %736 = sbr.rel (%p734) target = $region60
        $region59: #{forward.1} parent=47 // pred_region
          %s738 = ssub.s32 128, 128
          %739 = vsyncadd %s720, %s738
          %s740 = smul.addr %s29, 128
          %s741 = scalar_lea.hbm %s7, %s740
          %s743 = sshll.u32 %s723, 4
          %s744 = int_to_ptr.vmem [resolvable:$true] %s743
          %746 = dma.vmem_to_hbm [thread:$0]  %s744, 128, %s741, %s720
        $region60: #{forward.1} parent=47 // pred_fallthru
          _
        // Predicated region
        $region61: #{forward.1} parent=47 // pred_check
          %p747 = pneg %p225
        $region62: #{forward.1} parent=47 // pred_check_branch
          %749 = sbr.rel (%p747) target = $region64
        $region63: #{forward.1} parent=47 // pred_region
          %s751 = ssub.s32 128, 128
          %752 = vsyncadd %s725, %s751
          %s753 = smul.addr %s29, 128
          %s754 = scalar_lea.hbm %s8, %s753
          %s756 = sshll.u32 %s728, 4
          %s757 = int_to_ptr.vmem [resolvable:$true] %s756
          %759 = dma.vmem_to_hbm [thread:$0]  %s757, 128, %s754, %s725
        $region64: #{forward.1} parent=47 // pred_fallthru
          _
        // Predicated region
        $region65: #{forward.1} parent=47 // pred_check
          %p760 = pneg %p251
        $region66: #{forward.1} parent=47 // pred_check_branch
          %762 = sbr.rel (%p760) target = $region68
        $region67: #{forward.1} parent=47 // pred_region
          %s764 = ssub.s32 128, 128
          %765 = vsyncadd %s730, %s764
          %s766 = smul.addr %s29, 128
          %s767 = scalar_lea.hbm %s9, %s766
          %s769 = sshll.u32 %s733, 4
          %s770 = int_to_ptr.vmem [resolvable:$true] %s769
          %772 = dma.vmem_to_hbm [thread:$0]  %s770, 128, %s767, %s730
        $region68: #{forward.1} parent=47 // pred_fallthru
          _
      $region48: #{forward.1} parent=5 // pred_fallthru
        _
      %p773 = scmp.le.s32.totalorder 2, %s24
      // Predicated region
      $region69: #{forward.1} parent=5 // pred_check
        %p774 = pneg %p773
      $region70: #{forward.1} parent=5 // pred_check_branch
        %776 = sbr.rel (%p774) target = $region72
      $region71: #{forward.1} parent=5 // pred_region
        %s777 = ssub.s32 %s24, 2
        // Predicated region
        $region73: #{forward.1} parent=71 // pred_check
          %p778 = pneg %p205
        $region74: #{forward.1} parent=71 // pred_check_branch
          %780 = sbr.rel (%p778) target = $region76
        $region75: #{forward.1} parent=71 // pred_region
          %s781 = sand.u32 %s190, 1
          %s782 = scalar_lea.sflag [#allocation4], %s781
          %s783 = sand.u32 %s190, 1
          %s784 = smul.addr %s783, 8
          %s785 = scalar_lea.vmem [#allocation7], %s784
          %786 = dma.done %s782, 128
        $region76: #{forward.1} parent=71 // pred_fallthru
          _
        // Predicated region
        $region77: #{forward.1} parent=71 // pred_check
          %p787 = pneg %p231
        $region78: #{forward.1} parent=71 // pred_check_branch
          %789 = sbr.rel (%p787) target = $region80
        $region79: #{forward.1} parent=71 // pred_region
          %s790 = sand.u32 %s30, 1
          %s791 = scalar_lea.sflag [#allocation9], %s790
          %s792 = sand.u32 %s216, 1
          %s793 = smul.addr %s792, 8
          %s794 = scalar_lea.vmem [#allocation8], %s793
          %795 = dma.done %s791, 128
        $region80: #{forward.1} parent=71 // pred_fallthru
          _
        // Predicated region
        $region81: #{forward.1} parent=71 // pred_check
          %p796 = pneg %p257
        $region82: #{forward.1} parent=71 // pred_check_branch
          %798 = sbr.rel (%p796) target = $region84
        $region83: #{forward.1} parent=71 // pred_region
          %s799 = sand.u32 %s30, 1
          %s800 = scalar_lea.sflag [#allocation9], %s799
          %s801 = sand.u32 %s242, 1
          %s802 = smul.addr %s801, 8
          %s803 = scalar_lea.vmem [#allocation10], %s802
          %804 = dma.done %s800, 128
        $region84: #{forward.1} parent=71 // pred_fallthru
          _
      $region72: #{forward.1} parent=5 // pred_fallthru
        _
    $region6: #{forward.1} parent=1 // loop_footer
      %s28 = sadd.s32 1, %s24
    $region7: #{forward.1} parent=1 // loop_footer_branch
      %23 = sbr.rel target = $region3
    $region8: #{forward.1} parent=1 // loop_exit
      _
    %805 = vsyncpa [#allocation3], 1
    %s806 = scalar_lea.sflag [#allocation3], 1
    %807 = vsyncpa %s806, 1
    %808 = vsyncpa [#allocation6], 1
    %809 = vsyncpa [#allocation4], 1
    %s810 = scalar_lea.sflag [#allocation4], 1
    %811 = vsyncpa %s810, 1
    %812 = vsyncpa [#allocation9], 1
    %s813 = scalar_lea.sflag [#allocation9], 1
    %814 = vsyncpa %s813, 1

</llo_original>
